<compile_context>
chip_gen: v6e
topology: v6e:2x2x1
jax: 0.10.0
libtpu: 0.0.40
codegen_flags: <defaults>
</compile_context>

<pallas_src>
import functools

import jax
import jax.numpy as jnp
from jax import lax
from jax.experimental import pallas as pl
from jax.experimental.pallas import tpu as pltpu


def _round_up(x, m):
    return ((x + m - 1) // m) * m


def _cdiv(a, b):
    return (a + b - 1) // b


def housing_mlp_kernel(x_ref, w1_ref, b1_ref, w2_ref, b2_ref, w3_ref, b3_ref,
                       o_ref, *, sub_rows):
    # Resident blocks (constant index_map -> DMA'd once, reused every step).
    w1 = w1_ref[...]          # (F, 64)  bf16
    b1 = b1_ref[...]          # (1, 64)  f32
    w2 = w2_ref[...]          # (64, 32) bf16
    b2 = b2_ref[...]          # (1, 32)  f32
    w3 = w3_ref[...]          # (1, 32)  f32 (fc3 weight as a row)
    b3 = b3_ref[0, 0]         # scalar f32 in SMEM

    tm = x_ref.shape[0]       # static block row count
    n_sub = tm // sub_rows    # static trip count

    def body(s, carry):
        row = pl.multiple_of(s * sub_rows, sub_rows)

        # In-kernel bf16 cast of the f32 input sub-chunk (no standalone HBM
        # cast pass in the wrapper).
        x = x_ref[pl.ds(row, sub_rows), :].astype(jnp.bfloat16)

        # fc1 -> bias -> relu.  bf16 MXU operands, f32 accumulation; bias and
        # ReLU on the f32 accumulator (v5e-safe).
        h1 = jnp.dot(x, w1, preferred_element_type=jnp.float32)
        h1 = jnp.maximum(h1 + b1, 0.0)
        # dropout1: identity in inference mode.

        # fc2 -> bias -> relu.
        h2 = jnp.dot(h1.astype(jnp.bfloat16), w2,
                     preferred_element_type=jnp.float32)
        h2 = jnp.maximum(h2 + b2, 0.0)
        # dropout2: identity in inference mode.

        # fc3 (N=1, K=32): VPU multiply + XLU lane-reduce instead of a <1%-full
        # MXU pass.
        out = jnp.sum(h2 * w3, axis=-1, keepdims=True) + b3

        o_ref[pl.ds(row, sub_rows), :] = out
        return carry

    lax.fori_loop(0, n_sub, body, 0)


def housing_nn_forward(x, params, *, tile_rows=8192, sub_rows=512):
    """HousingNN forward (inference: dropout = identity).

    x: (B, F) float32.  params dict (weights stored transposed vs
    torch.nn.Linear, i.e. (in, out)):
      w1 (F, 64), b1 (64,), w2 (64, 32), b2 (32,), w3 (32, 1), b3 (1,)
    Returns (B, 1) float32.
    """
    B, F = x.shape

    # Weights are tiny: cast them once wrapper-side (negligible traffic).
    w1 = params["w1"].astype(jnp.bfloat16)
    w2 = params["w2"].astype(jnp.bfloat16)
    b1 = params["b1"].astype(jnp.float32).reshape(1, -1)
    b2 = params["b2"].astype(jnp.float32).reshape(1, -1)
    w3 = params["w3"].astype(jnp.float32).reshape(1, -1)   # (1, 32) row
    b3 = params["b3"].astype(jnp.float32).reshape(1, 1)    # scalar -> SMEM
    h1_dim, h2_dim = w1.shape[1], w2.shape[1]

    # ---- tile selection ---------------------------------------------------
    # sub-chunk: bounded vreg/VMEM footprint for h1/h2 inside the kernel.
    sub = max(8, min(sub_rows, _round_up(B, 8)))
    sub = _round_up(sub, 8)
    # batch tile: large (amortizes ~600-cycle/step overhead), multiple of sub.
    tm = min(_round_up(tile_rows, sub), _round_up(B, sub))
    # Keep >= 2 grid steps when there is enough work so the "parallel" batch
    # axis has something to shard across both TensorCores (v7x megacore).
    if B >= 2 * sub and _cdiv(B, tm) < 2:
        tm = _round_up(_cdiv(B, 2), sub)
    n_tiles = _cdiv(B, tm)          # no jnp.pad: Pallas masks the tail block
    grid = (n_tiles,)

    const = lambda i: (0, 0)        # resident blocks

    cost = pl.CostEstimate(
        flops=2 * n_tiles * tm * (F * h1_dim + h1_dim * h2_dim + h2_dim),
        transcendentals=0,
        bytes_accessed=(B * F * 4 + B * 4
                        + (w1.size + w2.size) * 2
                        + (b1.size + b2.size + w3.size + b3.size) * 4),
    )

    kernel = functools.partial(housing_mlp_kernel, sub_rows=sub)

    out = pl.pallas_call(
        kernel,
        out_shape=jax.ShapeDtypeStruct((B, 1), jnp.float32),
        grid=grid,
        in_specs=[
            pl.BlockSpec((tm, F), lambda i: (i, 0)),            # x: batch-tiled
            pl.BlockSpec(w1.shape, const),                      # resident
            pl.BlockSpec(b1.shape, const),
            pl.BlockSpec(w2.shape, const),
            pl.BlockSpec(b2.shape, const),
            pl.BlockSpec(w3.shape, const),
            pl.BlockSpec(memory_space=pltpu.MemorySpace.SMEM),  # b3 scalar
        ],
        out_specs=pl.BlockSpec((tm, 1), lambda i: (i, 0)),
        compiler_params=pltpu.CompilerParams(
            dimension_semantics=("parallel",),                  # megacore
            vmem_limit_bytes=32 * 1024 * 1024,                  # safe on v5e/v6e/v7x
        ),
        cost_estimate=cost,
    )(x.astype(jnp.float32), w1, b1, w2, b2, w3, b3)

    return out


def init_params(key, n_features):
    """Deterministic synthetic init matching nn.Linear shapes (stored as (in, out))."""
    k1, k2, k3, k4, k5, k6 = jax.random.split(key, 6)

    def linear_init(kw, kb, fan_in, fan_out):
        bound = 1.0 / jnp.sqrt(jnp.float32(fan_in))
        w = jax.random.uniform(kw, (fan_in, fan_out), jnp.float32, -bound, bound)
        b = jax.random.uniform(kb, (fan_out,), jnp.float32, -bound, bound)
        return w, b

    w1, b1 = linear_init(k1, k2, n_features, 64)
    w2, b2 = linear_init(k3, k4, 64, 32)
    w3, b3 = linear_init(k5, k6, 32, 1)
    return {"w1": w1, "b1": b1, "w2": w2, "b2": b2, "w3": w3, "b3": b3}


def reference_forward(x, params):
    """Pure-JAX reference mimicking the kernel's bf16 MXU operands / f32 accum."""
    xb = x.astype(jnp.bfloat16)
    w1 = params["w1"].astype(jnp.bfloat16)
    w2 = params["w2"].astype(jnp.bfloat16)
    h1 = jnp.maximum(
        jnp.dot(xb, w1, preferred_element_type=jnp.float32) + params["b1"], 0.0)
    h2 = jnp.maximum(
        jnp.dot(h1.astype(jnp.bfloat16), w2,
                preferred_element_type=jnp.float32) + params["b2"], 0.0)
    return jnp.dot(h2, params["w3"].astype(jnp.float32)) + params["b3"]


if __name__ == "__main__":
    key = jax.random.PRNGKey(0)
    k_param, k_x = jax.random.split(key)

    # California housing feature count is 8; small non-multiple batch so the
    # partial-tail (no-pad) path is exercised.
    batch, n_features = 37, 8
    params = init_params(k_param, n_features)
    x = jax.random.normal(k_x, (batch, n_features), jnp.float32)
    ref = reference_forward(x, params)

    # Tiny tiles: multi-step grid (3 tiles of 16 rows, last one partial) with
    # a 2-iteration inner sub-chunk loop and resident weights.
    out_small = jax.block_until_ready(
        housing_nn_forward(x, params, tile_rows=16, sub_rows=8))
    assert out_small.shape == (batch, 1)
    assert jnp.allclose(out_small, ref, atol=1e-3, rtol=1e-3), \
        float(jnp.max(jnp.abs(out_small - ref)))

    # Default (production) configuration: single big tile for this small batch.
    out_default = jax.block_until_ready(housing_nn_forward(x, params))
    assert out_default.shape == (batch, 1)
    assert jnp.allclose(out_default, ref, atol=1e-3, rtol=1e-3), \
        float(jnp.max(jnp.abs(out_default - ref)))

    print("KERNEL_OK")
</pallas_src>

<mosaic_0001>
module attributes {stable_mosaic.version = 11 : i64} {
  func.func @housing_mlp_kernel(%arg0: i32, %arg1: memref<16x8xf32, #tpu.memory_space<vmem>>, %arg2: memref<8x64xbf16, #tpu.memory_space<vmem>>, %arg3: memref<1x64xf32, #tpu.memory_space<vmem>>, %arg4: memref<64x32xbf16, #tpu.memory_space<vmem>>, %arg5: memref<1x32xf32, #tpu.memory_space<vmem>>, %arg6: memref<1x32xf32, #tpu.memory_space<vmem>>, %arg7: memref<1x1xf32, #tpu.memory_space<smem>>, %arg8: memref<16x1xf32, #tpu.memory_space<vmem>>) attributes {dimension_semantics = [#tpu.dimension_semantics<parallel>], iteration_bounds = array<i64: 3>, scalar_prefetch = 0 : i64, scratch_operands = 0 : i64, tpu.core_type = #tpu.core_type<tc>, window_params = [{transform_indices = @transform_0, window_bounds = array<i64: 16, 8>}, {pipeline_mode = #tpu.pipeline_mode<synchronous>, transform_indices = @transform_1, window_bounds = array<i64: 8, 64>}, {pipeline_mode = #tpu.pipeline_mode<synchronous>, transform_indices = @transform_2, window_bounds = array<i64: 1, 64>}, {pipeline_mode = #tpu.pipeline_mode<synchronous>, transform_indices = @transform_3, window_bounds = array<i64: 64, 32>}, {pipeline_mode = #tpu.pipeline_mode<synchronous>, transform_indices = @transform_4, window_bounds = array<i64: 1, 32>}, {pipeline_mode = #tpu.pipeline_mode<synchronous>, transform_indices = @transform_5, window_bounds = array<i64: 1, 32>}, {transform_indices = @transform_6, window_bounds = array<i64: 1, 1>}, {transform_indices = @transform_7, window_bounds = array<i64: 16, 1>}]} {
    %c0 = arith.constant 0 : index
    %c0_0 = arith.constant 0 : index
    %0 = vector.load %arg2[%c0, %c0_0] : memref<8x64xbf16, #tpu.memory_space<vmem>>, vector<8x64xbf16>
    %c0_1 = arith.constant 0 : index
    %c0_2 = arith.constant 0 : index
    %1 = vector.load %arg3[%c0_1, %c0_2] : memref<1x64xf32, #tpu.memory_space<vmem>>, vector<1x64xf32>
    %c0_3 = arith.constant 0 : index
    %c0_4 = arith.constant 0 : index
    %2 = vector.load %arg4[%c0_3, %c0_4] : memref<64x32xbf16, #tpu.memory_space<vmem>>, vector<64x32xbf16>
    %c0_5 = arith.constant 0 : index
    %c0_6 = arith.constant 0 : index
    %3 = vector.load %arg5[%c0_5, %c0_6] : memref<1x32xf32, #tpu.memory_space<vmem>>, vector<1x32xf32>
    %c0_7 = arith.constant 0 : index
    %c0_8 = arith.constant 0 : index
    %4 = vector.load %arg6[%c0_7, %c0_8] : memref<1x32xf32, #tpu.memory_space<vmem>>, vector<1x32xf32>
    %c0_9 = arith.constant 0 : index
    %c0_10 = arith.constant 0 : index
    %5 = memref.load %arg7[%c0_9, %c0_10] : memref<1x1xf32, #tpu.memory_space<smem>>
    %c0_i32 = arith.constant 0 : i32
    %c2_i32 = arith.constant 2 : i32
    %6 = arith.addi %c0_i32, %c2_i32 : i32
    %c1_i32 = arith.constant 1 : i32
    scf.for %arg9 = %c0_i32 to %6 step %c1_i32  : i32 {
      %c8_i32 = arith.constant 8 : i32
      %7 = arith.muli %arg9, %c8_i32 : i32
      %8 = tpu.assume_multiple %7, 8 : i32
      %9 = arith.index_cast %8 : i32 to index
      %c0_12 = arith.constant 0 : index
      %10 = vector.load %arg1[%9, %c0_12] : memref<16x8xf32, #tpu.memory_space<vmem>>, vector<8x8xf32>
      %11 = arith.truncf %10 : vector<8x8xf32> to vector<8x8xbf16>
      %cst = arith.constant dense<0.000000e+00> : vector<8x64xf32>
      %12 = tpu.matmul %11, %0, %cst {dimension_numbers = #tpu.dot_dimension_numbers<[1], [0], [0], [1], [0, 0, 1, 1], [], []>} : vector<8x8xbf16>, vector<8x64xbf16>, vector<8x64xf32> -> vector<8x64xf32>
      %13 = vector.broadcast %1 : vector<1x64xf32> to vector<8x64xf32>
      %14 = arith.addf %12, %13 : vector<8x64xf32>
      %cst_13 = arith.constant 0.000000e+00 : f32
      %15 = vector.broadcast %cst_13 : f32 to vector<8x64xf32>
      %16 = arith.maximumf %14, %15 : vector<8x64xf32>
      %17 = arith.truncf %16 : vector<8x64xf32> to vector<8x64xbf16>
      %cst_14 = arith.constant dense<0.000000e+00> : vector<8x32xf32>
      %18 = tpu.matmul %17, %2, %cst_14 {dimension_numbers = #tpu.dot_dimension_numbers<[1], [0], [0], [1], [0, 0, 1, 1], [], []>} : vector<8x64xbf16>, vector<64x32xbf16>, vector<8x32xf32> -> vector<8x32xf32>
      %19 = vector.broadcast %3 : vector<1x32xf32> to vector<8x32xf32>
      %20 = arith.addf %18, %19 : vector<8x32xf32>
      %cst_15 = arith.constant 0.000000e+00 : f32
      %21 = vector.broadcast %cst_15 : f32 to vector<8x32xf32>
      %22 = arith.maximumf %20, %21 : vector<8x32xf32>
      %23 = vector.broadcast %4 : vector<1x32xf32> to vector<8x32xf32>
      %24 = arith.mulf %22, %23 : vector<8x32xf32>
      %cst_16 = arith.constant dense<0.000000e+00> : vector<8xf32>
      %25 = vector.multi_reduction <add>, %24, %cst_16 [1] : vector<8x32xf32> to vector<8xf32>
      %26 = vector.shape_cast %25 : vector<8xf32> to vector<8x1xf32>
      %27 = vector.broadcast %5 : f32 to vector<8x1xf32>
      %28 = arith.addf %26, %27 : vector<8x1xf32>
      %29 = arith.index_cast %8 : i32 to index
      %c0_17 = arith.constant 0 : index
      %30 = vector.load %arg8[%29, %c0_17] : memref<16x1xf32, #tpu.memory_space<vmem>>, vector<8x1xf32>
      tpu.vector_store %arg8[%29, %c0_17], %28 {strides = array<i32>} : memref<16x1xf32, #tpu.memory_space<vmem>>, vector<8x1xf32>,
    }
    %c2_i32_11 = arith.constant 2 : i32
    return
  }
  func.func @transform_0(%arg0: i32) -> (i32, i32) {
    %c0_i32 = arith.constant 0 : i32
    %c0_i32_0 = arith.constant 0 : i32
    return %arg0, %c0_i32 : i32, i32
  }
  func.func @transform_1(%arg0: i32) -> (i32, i32) {
    %c0_i32 = arith.constant 0 : i32
    %c0_i32_0 = arith.constant 0 : i32
    %c0_i32_1 = arith.constant 0 : i32
    return %c0_i32, %c0_i32_0 : i32, i32
  }
  func.func @transform_2(%arg0: i32) -> (i32, i32) {
    %c0_i32 = arith.constant 0 : i32
    %c0_i32_0 = arith.constant 0 : i32
    %c0_i32_1 = arith.constant 0 : i32
    return %c0_i32, %c0_i32_0 : i32, i32
  }
  func.func @transform_3(%arg0: i32) -> (i32, i32) {
    %c0_i32 = arith.constant 0 : i32
    %c0_i32_0 = arith.constant 0 : i32
    %c0_i32_1 = arith.constant 0 : i32
    return %c0_i32, %c0_i32_0 : i32, i32
  }
  func.func @transform_4(%arg0: i32) -> (i32, i32) {
    %c0_i32 = arith.constant 0 : i32
    %c0_i32_0 = arith.constant 0 : i32
    %c0_i32_1 = arith.constant 0 : i32
    return %c0_i32, %c0_i32_0 : i32, i32
  }
  func.func @transform_5(%arg0: i32) -> (i32, i32) {
    %c0_i32 = arith.constant 0 : i32
    %c0_i32_0 = arith.constant 0 : i32
    %c0_i32_1 = arith.constant 0 : i32
    return %c0_i32, %c0_i32_0 : i32, i32
  }
  func.func @transform_6(%arg0: i32) -> (i32, i32) {
    %c0_i32 = arith.constant 0 : i32
    %c0_i32_0 = arith.constant 0 : i32
    %c0_i32_1 = arith.constant 0 : i32
    return %c0_i32, %c0_i32_0 : i32, i32
  }
  func.func @transform_7(%arg0: i32) -> (i32, i32) {
    %c0_i32 = arith.constant 0 : i32
    %c0_i32_0 = arith.constant 0 : i32
    return %arg0, %c0_i32 : i32, i32
  }
}

</mosaic_0001>

<llo_original>
// kernel: tpu_custom_call.1
$region0: #{tpu_custom_call.1}
  #allocation0 [shape = 'u32[]', space=smem, size = 0x4, offset = 0x4, fixed_abs, tag = 'smem constant byte address 0x4 - core index']
  #allocation1 [shape = 'u32[144,128]{1,0:T(1,128)}', space=vmem, size = 0x12000, scoped, tag = 'internal scratch']
  #allocation2 [shape = 'f32[1,1]{1,0:T(1,128)S(6)}', space=smem, size = 0x200, scoped, tag = 'scoped memory for tpu_custom_call.1']
  %s0 = inlined_call_operand.vmem [shape: f32[37,8], index: 0, kind: input, shape index: {}]
  %s1 = inlined_call_operand.vmem [shape: bf16[8,64], index: 1, kind: input, shape index: {}]
  %s2 = inlined_call_operand.vmem [shape: f32[1,64], index: 2, kind: input, shape index: {}]
  %s3 = inlined_call_operand.vmem [shape: bf16[64,32], index: 3, kind: input, shape index: {}]
  %s4 = inlined_call_operand.vmem [shape: f32[1,32], index: 4, kind: input, shape index: {}]
  %s5 = inlined_call_operand.vmem [shape: f32[1,32], index: 5, kind: input, shape index: {}]
  %s6 = inlined_call_operand.<no memory space> [shape: f32[1,1], index: 6, kind: input, shape index: {}]
  %s7 = inlined_call_operand.vmem [shape: f32[37,1], index: 7, kind: output, shape index: {}]
  %s8 = sld [smem:[#allocation0]]
  $region116: #{tpu_custom_call.1} parent=0
    _
  %s10 = ssub.s32 1, %s8
  %s11 = scalar_select 0, %s10, %s8
  %12 = sst [smem:[#allocation2]] %s6
  $region1: #{tpu_custom_call.1} parent=0
    #allocation3 [shape = 'u8[16384]{0}', space=vmem, size = 0x4000, scoped, tag = 'output window, operand 0']
    loop: start=0, step=1, limit=5
    $region2: #{tpu_custom_call.1} parent=1 // loop_pre_header
      _
    $region3: #{tpu_custom_call.1} parent=1 // loop_header
      %s14 = sphi 0, %s18
      %p15 = scmp.ge.s32.totalorder %s14, 5
      %s24 = sphi 0, %s26
      %s27 = sphi 0, %s24
      %s28 = sphi 0, %s27
      %s44 = sphi 0, %s28
      %s48 = sphi 0, %s48
      %s50 = sphi 0, %s48
      %s51 = sphi 0, %s50
      %s65 = sphi 0, %s51
      %s69 = sphi 0, %s69
      %s71 = sphi 0, %s69
      %s72 = sphi 0, %s71
      %s86 = sphi 0, %s72
      %s90 = sphi 0, %s90
      %s92 = sphi 0, %s90
      %s93 = sphi 0, %s92
      %s107 = sphi 0, %s93
      %s111 = sphi 0, %s111
      %s113 = sphi 0, %s111
      %s114 = sphi 0, %s113
      %s128 = sphi 0, %s114
      %s132 = sphi 0, %s132
      %s134 = sphi 0, %s132
      %s135 = sphi 0, %s134
      %s149 = sphi 0, %s135
      %s153 = sphi 0, %s153
      %s155 = sphi 0, %s153
      %s156 = sphi 0, %s155
      %s170 = sphi 0, %s156
      %s176 = sphi 0, %s178
      %s179 = sphi 0, %s176
      %s180 = sphi 0, %s179
      %s196 = sphi 0, %s180
    $region4: #{tpu_custom_call.1} parent=1 // loop_header_branch
      %17 = sbr.rel (%p15) target = $region8
    $region5: #{tpu_custom_call.1} parent=1 // loop_body
      %s19 = ssub.s32 %s14, 1
      %s20 = ssub.s32 %s14, 2
      %s21 = sadd.s32 %s14, 1
      %s22 = ssub.s32 %s14, %s21
      %p23 = scmp.eq.s32.totalorder %s22, 0
      %s25 = sadd.s32 %s24, 1
      %s26 = scalar_select %p23, %s24, %s25
      %p29 = pneg %p23
      %p30 = scmp.eq.s32.totalorder %s14, 2
      %p31 = por %p29, %p30
      %p32 = scmp.ne.s32.totalorder %s24, %s27
      %p33 = scmp.eq.s32.totalorder %s14, 0
      %p34 = por %p32, %p33
      %p35 = scmp.ne.s32.totalorder %s24, %s27
      %p36 = scmp.eq.s32.totalorder %s19, 2
      %p37 = por %p35, %p36
      %p38 = scmp.ne.s32.totalorder %s27, %s28
      %p39 = scmp.eq.s32.totalorder %s19, 0
      %p40 = por %p38, %p39
      %p41 = scmp.ne.s32.totalorder %s27, %s28
      %p42 = scmp.eq.s32.totalorder %s20, 2
      %p43 = por %p41, %p42
      %p45 = scmp.ne.s32.totalorder %s28, %s44
      %p46 = scmp.eq.s32.totalorder %s20, 0
      %p47 = por %p45, %p46
      %s49 = sadd.s32 %s48, 1
      %p52 = scmp.eq.s32.totalorder %s14, 2
      %p53 = scmp.ne.s32.totalorder %s48, %s50
      %p54 = scmp.eq.s32.totalorder %s14, 0
      %p55 = por %p53, %p54
      %p56 = scmp.ne.s32.totalorder %s48, %s50
      %p57 = scmp.eq.s32.totalorder %s19, 2
      %p58 = por %p56, %p57
      %p59 = scmp.ne.s32.totalorder %s50, %s51
      %p60 = scmp.eq.s32.totalorder %s19, 0
      %p61 = por %p59, %p60
      %p62 = scmp.ne.s32.totalorder %s50, %s51
      %p63 = scmp.eq.s32.totalorder %s20, 2
      %p64 = por %p62, %p63
      %p66 = scmp.ne.s32.totalorder %s51, %s65
      %p67 = scmp.eq.s32.totalorder %s20, 0
      %p68 = por %p66, %p67
      %s70 = sadd.s32 %s69, 1
      %p73 = scmp.eq.s32.totalorder %s14, 2
      %p74 = scmp.ne.s32.totalorder %s69, %s71
      %p75 = scmp.eq.s32.totalorder %s14, 0
      %p76 = por %p74, %p75
      %p77 = scmp.ne.s32.totalorder %s69, %s71
      %p78 = scmp.eq.s32.totalorder %s19, 2
      %p79 = por %p77, %p78
      %p80 = scmp.ne.s32.totalorder %s71, %s72
      %p81 = scmp.eq.s32.totalorder %s19, 0
      %p82 = por %p80, %p81
      %p83 = scmp.ne.s32.totalorder %s71, %s72
      %p84 = scmp.eq.s32.totalorder %s20, 2
      %p85 = por %p83, %p84
      %p87 = scmp.ne.s32.totalorder %s72, %s86
      %p88 = scmp.eq.s32.totalorder %s20, 0
      %p89 = por %p87, %p88
      %s91 = sadd.s32 %s90, 1
      %p94 = scmp.eq.s32.totalorder %s14, 2
      %p95 = scmp.ne.s32.totalorder %s90, %s92
      %p96 = scmp.eq.s32.totalorder %s14, 0
      %p97 = por %p95, %p96
      %p98 = scmp.ne.s32.totalorder %s90, %s92
      %p99 = scmp.eq.s32.totalorder %s19, 2
      %p100 = por %p98, %p99
      %p101 = scmp.ne.s32.totalorder %s92, %s93
      %p102 = scmp.eq.s32.totalorder %s19, 0
      %p103 = por %p101, %p102
      %p104 = scmp.ne.s32.totalorder %s92, %s93
      %p105 = scmp.eq.s32.totalorder %s20, 2
      %p106 = por %p104, %p105
      %p108 = scmp.ne.s32.totalorder %s93, %s107
      %p109 = scmp.eq.s32.totalorder %s20, 0
      %p110 = por %p108, %p109
      %s112 = sadd.s32 %s111, 1
      %p115 = scmp.eq.s32.totalorder %s14, 2
      %p116 = scmp.ne.s32.totalorder %s111, %s113
      %p117 = scmp.eq.s32.totalorder %s14, 0
      %p118 = por %p116, %p117
      %p119 = scmp.ne.s32.totalorder %s111, %s113
      %p120 = scmp.eq.s32.totalorder %s19, 2
      %p121 = por %p119, %p120
      %p122 = scmp.ne.s32.totalorder %s113, %s114
      %p123 = scmp.eq.s32.totalorder %s19, 0
      %p124 = por %p122, %p123
      %p125 = scmp.ne.s32.totalorder %s113, %s114
      %p126 = scmp.eq.s32.totalorder %s20, 2
      %p127 = por %p125, %p126
      %p129 = scmp.ne.s32.totalorder %s114, %s128
      %p130 = scmp.eq.s32.totalorder %s20, 0
      %p131 = por %p129, %p130
      %s133 = sadd.s32 %s132, 1
      %p136 = scmp.eq.s32.totalorder %s14, 2
      %p137 = scmp.ne.s32.totalorder %s132, %s134
      %p138 = scmp.eq.s32.totalorder %s14, 0
      %p139 = por %p137, %p138
      %p140 = scmp.ne.s32.totalorder %s132, %s134
      %p141 = scmp.eq.s32.totalorder %s19, 2
      %p142 = por %p140, %p141
      %p143 = scmp.ne.s32.totalorder %s134, %s135
      %p144 = scmp.eq.s32.totalorder %s19, 0
      %p145 = por %p143, %p144
      %p146 = scmp.ne.s32.totalorder %s134, %s135
      %p147 = scmp.eq.s32.totalorder %s20, 2
      %p148 = por %p146, %p147
      %p150 = scmp.ne.s32.totalorder %s135, %s149
      %p151 = scmp.eq.s32.totalorder %s20, 0
      %p152 = por %p150, %p151
      %s154 = sadd.s32 %s153, 1
      %p157 = scmp.eq.s32.totalorder %s14, 2
      %p158 = scmp.ne.s32.totalorder %s153, %s155
      %p159 = scmp.eq.s32.totalorder %s14, 0
      %p160 = por %p158, %p159
      %p161 = scmp.ne.s32.totalorder %s153, %s155
      %p162 = scmp.eq.s32.totalorder %s19, 2
      %p163 = por %p161, %p162
      %p164 = scmp.ne.s32.totalorder %s155, %s156
      %p165 = scmp.eq.s32.totalorder %s19, 0
      %p166 = por %p164, %p165
      %p167 = scmp.ne.s32.totalorder %s155, %s156
      %p168 = scmp.eq.s32.totalorder %s20, 2
      %p169 = por %p167, %p168
      %p171 = scmp.ne.s32.totalorder %s156, %s170
      %p172 = scmp.eq.s32.totalorder %s20, 0
      %p173 = por %p171, %p172
      %s174 = ssub.s32 %s14, %s21
      %p175 = scmp.eq.s32.totalorder %s174, 0
      %s177 = sadd.s32 %s176, 1
      %s178 = scalar_select %p175, %s176, %s177
      %p181 = pneg %p175
      %p182 = scmp.eq.s32.totalorder %s14, 2
      %p183 = por %p181, %p182
      %p184 = scmp.ne.s32.totalorder %s176, %s179
      %p185 = scmp.eq.s32.totalorder %s14, 0
      %p186 = por %p184, %p185
      %p187 = scmp.ne.s32.totalorder %s176, %s179
      %p188 = scmp.eq.s32.totalorder %s19, 2
      %p189 = por %p187, %p188
      %p190 = scmp.ne.s32.totalorder %s179, %s180
      %p191 = scmp.eq.s32.totalorder %s19, 0
      %p192 = por %p190, %p191
      %p193 = scmp.ne.s32.totalorder %s179, %s180
      %p194 = scmp.eq.s32.totalorder %s20, 2
      %p195 = por %p193, %p194
      %p197 = scmp.ne.s32.totalorder %s180, %s196
      %p198 = scmp.eq.s32.totalorder %s20, 0
      %p199 = por %p197, %p198
      %p200 = scmp.le.s32.totalorder 1, %s14
      %p201 = scmp.lt.s32.totalorder %s14, 4
      %p202 = pnand %p200, %p201
      %p203 = pneg %p202
      // Predicated region
      $region9: #{tpu_custom_call.1} parent=5 // pred_check
        _
      $region10: #{tpu_custom_call.1} parent=5 // pred_check_branch
        %205 = sbr.rel (%p202) target = $region12
      $region11: #{tpu_custom_call.1} parent=5 // pred_region
        %s206 = ssub.s32 %s14, 1
        // Predicated region
        $region13: #{tpu_custom_call.1} parent=11 // pred_check
          %p207 = pneg %p61
        $region14: #{tpu_custom_call.1} parent=11 // pred_check_branch
          %209 = sbr.rel (%p207) target = $region16
        $region15: #{tpu_custom_call.1} parent=11 // pred_region
          _
        $region16: #{tpu_custom_call.1} parent=11 // pred_fallthru
          _
        // Predicated region
        $region17: #{tpu_custom_call.1} parent=11 // pred_check
          %p210 = pneg %p82
        $region18: #{tpu_custom_call.1} parent=11 // pred_check_branch
          %212 = sbr.rel (%p210) target = $region20
        $region19: #{tpu_custom_call.1} parent=11 // pred_region
          _
        $region20: #{tpu_custom_call.1} parent=11 // pred_fallthru
          _
        // Predicated region
        $region21: #{tpu_custom_call.1} parent=11 // pred_check
          %p213 = pneg %p103
        $region22: #{tpu_custom_call.1} parent=11 // pred_check_branch
          %215 = sbr.rel (%p213) target = $region24
        $region23: #{tpu_custom_call.1} parent=11 // pred_region
          _
        $region24: #{tpu_custom_call.1} parent=11 // pred_fallthru
          _
        // Predicated region
        $region25: #{tpu_custom_call.1} parent=11 // pred_check
          %p216 = pneg %p124
        $region26: #{tpu_custom_call.1} parent=11 // pred_check_branch
          %218 = sbr.rel (%p216) target = $region28
        $region27: #{tpu_custom_call.1} parent=11 // pred_region
          _
        $region28: #{tpu_custom_call.1} parent=11 // pred_fallthru
          _
        // Predicated region
        $region29: #{tpu_custom_call.1} parent=11 // pred_check
          %p219 = pneg %p145
        $region30: #{tpu_custom_call.1} parent=11 // pred_check_branch
          %221 = sbr.rel (%p219) target = $region32
        $region31: #{tpu_custom_call.1} parent=11 // pred_region
          _
        $region32: #{tpu_custom_call.1} parent=11 // pred_fallthru
          _
        // Predicated region
        $region33: #{tpu_custom_call.1} parent=11 // pred_check
          %p222 = pneg %p166
        $region34: #{tpu_custom_call.1} parent=11 // pred_check_branch
          %224 = sbr.rel (%p222) target = $region36
        $region35: #{tpu_custom_call.1} parent=11 // pred_region
          _
        $region36: #{tpu_custom_call.1} parent=11 // pred_fallthru
          _
      $region12: #{tpu_custom_call.1} parent=5 // pred_fallthru
        _
      %p225 = scmp.lt.s32.totalorder %s14, 3
      // Predicated region
      $region37: #{tpu_custom_call.1} parent=5 // pred_check
        %p226 = pneg %p225
      $region38: #{tpu_custom_call.1} parent=5 // pred_check_branch
        %228 = sbr.rel (%p226) target = $region40
      $region39: #{tpu_custom_call.1} parent=5 // pred_region
        // Predicated region
        $region41: #{tpu_custom_call.1} parent=39 // pred_check
          %p229 = pneg %p34
        $region42: #{tpu_custom_call.1} parent=39 // pred_check_branch
          %231 = sbr.rel (%p229) target = $region44
        $region43: #{tpu_custom_call.1} parent=39 // pred_region
          %s232 = smul.u32 2, %s14
          %s233 = ssub.s32 5, %s232
          %p234 = scmp.lt.s32.totalorder %s233, 2
          %s235 = scalar_select %p234, %s233, 2
          %s236 = smul.u32 128, %s235
          %p237 = scmp.lt.s32.totalorder %s232, 4
          %s238 = scalar_select %p237, %s232, 4
          %s239 = smul.addr %s238, 8
          %s240 = scalar_lea.vmem %s0, %s239
          %s241 = smul.u32 2, %s14
          %s242 = ssub.s32 5, %s241
          %p243 = scmp.lt.s32.totalorder %s242, 2
          %s244 = scalar_select %p243, %s242, 2
          %s245 = smul.u32 128, %s244
        $region44: #{tpu_custom_call.1} parent=39 // pred_fallthru
          _
      $region40: #{tpu_custom_call.1} parent=5 // pred_fallthru
        _
      %p246 = scmp.le.s32.totalorder 1, %s14
      %p247 = scmp.lt.s32.totalorder %s14, 4
      %p248 = pnand %p246, %p247
      %p249 = pneg %p248
      // Predicated region
      $region45: #{tpu_custom_call.1} parent=5 // pred_check
        _
      $region46: #{tpu_custom_call.1} parent=5 // pred_check_branch
        %251 = sbr.rel (%p248) target = $region48
      $region47: #{tpu_custom_call.1} parent=5 // pred_region
        %s252 = ssub.s32 %s14, 1
        %s253 = smul.u32 2, %s19
        %s254 = ssub.s32 5, %s253
        %p255 = scmp.lt.s32.totalorder %s254, 2
        %s256 = scalar_select %p255, %s254, 2
        %s257 = smul.u32 128, %s256
        %p258 = scmp.lt.s32.totalorder %s253, 4
        %s259 = scalar_select %p258, %s253, 4
        %s260 = smul.addr %s259, 8
        %s261 = scalar_lea.vmem %s0, %s260
        %p262 = pneg %p40
        %p263 = pneg %p37
        %p264 = pneg %p61
        %p265 = pneg %p58
        %p266 = pneg %p82
        %p267 = pneg %p79
        %p268 = pneg %p103
        %p269 = pneg %p100
        %p270 = pneg %p124
        %p271 = pneg %p121
        %p272 = pneg %p145
        %p273 = pneg %p142
        %p274 = pneg %p166
        %p275 = pneg %p163
        %p276 = pneg %p192
        %p277 = pneg %p189
        %s278 = sand.u32 %s179, 1
        %s279 = sand.u32 %s179, 1
        %s280 = smul.addr %s279, 16
        %s281 = scalar_lea.vmem [#allocation3], %s280
        %s282 = smul.u32 2, %s19
        %s283 = ssub.s32 5, %s282
        %p284 = scmp.lt.s32.totalorder %s283, 2
        %s285 = scalar_select %p284, %s283, 2
        %s286 = smul.u32 128, %s285
        %p287 = scmp.lt.s32.totalorder %s282, 4
        %s288 = scalar_select %p287, %s282, 4
        %s289 = smul.addr %s288, 8
        %s290 = scalar_lea.vmem %s0, %s289
        %s291 = smul.u32 2, %s19
        %s292 = ssub.s32 5, %s291
        %p293 = scmp.lt.s32.totalorder %s292, 2
        %s294 = scalar_select %p293, %s292, 2
        %s295 = smul.u32 128, %s294
        %s296 = smul.u32 2, %s19
        %s297 = ssub.s32 5, %s296
        %p298 = scmp.lt.s32.totalorder %s297, 2
        %s299 = scalar_select %p298, %s297, 2
        %s300 = smul.u32 128, %s299
        %v302 = vld [vmem:[%s1] sm:$0xf]
        %v303 = vld [vmem:[%s2] sm:$0x1]
        %v304 = vld [vmem:[%s3] sm:$0xf]
        %v305 = vld [vmem:[%s3 + $0x4] sm:$0xf]
        %v306 = vld [vmem:[%s3 + $0x8] sm:$0xf]
        %v307 = vld [vmem:[%s3 + $0xc] sm:$0xf]
        %v308 = vld [vmem:[%s3 + $0x10] sm:$0xf]
        %v309 = vld [vmem:[%s3 + $0x14] sm:$0xf]
        %v310 = vld [vmem:[%s3 + $0x18] sm:$0xf]
        %v311 = vld [vmem:[%s3 + $0x1c] sm:$0xf]
        %v312 = vld [vmem:[%s4] sm:$0x1]
        %v313 = vld [vmem:[%s5] sm:$0x1]
        %s314 = sld [smem:[#allocation2]]
        loop: start=0, step=1, limit=2
        $region49: #{tpu_custom_call.1} parent=47 // loop_pre_header
          _
        $region50: #{tpu_custom_call.1} parent=47 // loop_header
          %s316 = sphi 0, %s320
          %p317 = scmp.ge.s32.totalorder %s316, 2
        $region51: #{tpu_custom_call.1} parent=47 // loop_header_branch
          %319 = sbr.rel (%p317) target = $region55
        $region52: #{tpu_custom_call.1} parent=47 // loop_body
          %s321 = smul.u32 %s316, 8
          %s322 = scalar_lea.vmem %s290, %s321
          %v323 = vld [vmem:[%s322] sm:$0xff]
          %v324 = vpack.c.bf16 %v323, %v323
          %v326 = vlaneseq
          %v327 = vshrl.u32 %v326, 7
          %v328 = vsub.s32 0, %v327
          %v329 = vrot.slane %v303, %v328
          %vm331 = vcmask 64512
          %v333 = vsel %vm331, %v324, 0
          %vm335 = vcmask 1043456
          %v337 = vsel %vm335, %v302, 0
          %339 = vmatprep.subr.bf16.mxu0 0
          %340 = vmatpush1.bf16.msra.mxu0 0
          %341 = vmatprep.subr.bf16.mxu0 0
          %342 = vmatpush1.bf16.msra.mxu0 0
          %343 = vmatprep.subr.bf16.mxu0 0
          %344 = vmatpush1.bf16.msra.mxu0 0
          %345 = vmatprep.subr.bf16.mxu0 0
          %346 = vmatpush1.bf16.msra.mxu0 0
          %347 = vmatprep.subr.bf16.mxu0 0
          %348 = vmatpush1.bf16.msra.mxu0 0
          %349 = vmatprep.subr.bf16.mxu0 0
          %350 = vmatpush1.bf16.msra.mxu0 0
          %351 = vmatprep.subr.bf16.mxu0 0
          %352 = vmatpush1.bf16.msra.mxu0 0
          %353 = vmatprep.subr.bf16.mxu0 0
          %354 = vmatpush1.bf16.msra.mxu0 %v337
          %355 = vmatprep.subr.bf16.mxu0 0
          %356 = vmatpush2.bf16.msra.mxu0 0
          %357 = vmatprep.subr.bf16.mxu0 0
          %358 = vmatpush2.bf16.msra.mxu0 0
          %359 = vmatprep.subr.bf16.mxu0 0
          %360 = vmatpush2.bf16.msra.mxu0 0
          %361 = vmatprep.subr.bf16.mxu0 0
          %362 = vmatpush2.bf16.msra.mxu0 0
          %363 = vmatprep.subr.bf16.mxu0 0
          %364 = vmatpush2.bf16.msra.mxu0 0
          %365 = vmatprep.subr.bf16.mxu0 0
          %366 = vmatpush2.bf16.msra.mxu0 0
          %367 = vmatprep.subr.bf16.mxu0 0
          %368 = vmatpush2.bf16.msra.mxu0 0
          %369 = vmatprep.subr.bf16.mxu0 0
          %370 = vmatpush2.bf16.msra.mxu0 0
          %371 = vmatprep.mubr.bf16.mxu0 0
          %372 = vmatmul.mubr.bf16.gmra.mxu0 %v333
          %v373 = vpop.f32.mrf.mxu0
          %v374 = vadd.f32 %v329, %v373
          %v375 = vpop.f32.mrf.mxu0
          %v376 = vpop.f32.mrf.mxu0
          %v377 = vpop.f32.mrf.mxu0
          %378 = vdwg.mxu0
          %v379 = vmax.f32 %v374, 0.0
          %v380 = vpack.c.bf16 %v379, %v379
          %v382 = vlaneseq
          %v383 = vshrl.u32 %v382, 7
          %v384 = vsub.s32 0, %v383
          %v385 = vrot.slane %v312, %v384
          %v395 = vunpack.c.l.b16 %v304
          %v396 = vunpack.c.l.b16 %v305
          %v397 = vunpack.c.l.b16 %v306
          %v398 = vunpack.c.l.b16 %v307
          %v399 = vunpack.c.l.b16 %v308
          %v400 = vunpack.c.l.b16 %v309
          %v401 = vunpack.c.l.b16 %v310
          %v402 = vunpack.c.l.b16 %v311
          %v403 = vpack.c.b16 %v396, %v395
          %v404 = vpack.c.b16 %v398, %v397
          %v405 = vpack.c.b16 %v400, %v399
          %v406 = vpack.c.b16 %v402, %v401
          %vm411 = vcmask 523264
          %v413 = vsel %vm411, %v380, 0
          %415 = vmatprep.subr.bf16.mxu0 0
          %416 = vmatpush1.bf16.msra.mxu0 0
          %417 = vmatprep.subr.bf16.mxu0 0
          %418 = vmatpush1.bf16.msra.mxu0 0
          %419 = vmatprep.subr.bf16.mxu0 0
          %420 = vmatpush1.bf16.msra.mxu0 0
          %421 = vmatprep.subr.bf16.mxu0 0
          %422 = vmatpush1.bf16.msra.mxu0 0
          %423 = vmatprep.subr.bf16.mxu0 0
          %424 = vmatpush1.bf16.msra.mxu0 %v406
          %425 = vmatprep.subr.bf16.mxu0 0
          %426 = vmatpush1.bf16.msra.mxu0 %v405
          %427 = vmatprep.subr.bf16.mxu0 0
          %428 = vmatpush1.bf16.msra.mxu0 %v404
          %429 = vmatprep.subr.bf16.mxu0 0
          %430 = vmatpush1.bf16.msra.mxu0 %v403
          %431 = vmatprep.subr.bf16.mxu0 0
          %432 = vmatpush2.bf16.msra.mxu0 0
          %433 = vmatprep.subr.bf16.mxu0 0
          %434 = vmatpush2.bf16.msra.mxu0 0
          %435 = vmatprep.subr.bf16.mxu0 0
          %436 = vmatpush2.bf16.msra.mxu0 0
          %437 = vmatprep.subr.bf16.mxu0 0
          %438 = vmatpush2.bf16.msra.mxu0 0
          %439 = vmatprep.subr.bf16.mxu0 0
          %440 = vmatpush2.bf16.msra.mxu0 0
          %441 = vmatprep.subr.bf16.mxu0 0
          %442 = vmatpush2.bf16.msra.mxu0 0
          %443 = vmatprep.subr.bf16.mxu0 0
          %444 = vmatpush2.bf16.msra.mxu0 0
          %445 = vmatprep.subr.bf16.mxu0 0
          %446 = vmatpush2.bf16.msra.mxu0 0
          %447 = vmatprep.mubr.bf16.mxu0 0
          %448 = vmatmul.mubr.bf16.gmra.mxu0 %v413
          %v449 = vpop.f32.mrf.mxu0
          %v450 = vadd.f32 %v385, %v449
          %v451 = vpop.f32.mrf.mxu0
          %v452 = vpop.f32.mrf.mxu0
          %v453 = vpop.f32.mrf.mxu0
          %454 = vdwg.mxu0
          %v455 = vmax.f32 %v450, 0.0
          %v457 = vlaneseq
          %v458 = vshrl.u32 %v457, 7
          %v459 = vsub.s32 0, %v458
          %v460 = vrot.slane %v313, %v459
          %v462 = vmul.f32 %v455, %v460
          %vm463 = vcmask 261120
          %v464 = vsel %vm463, %v462, 0.0
          %465 = vadd.xlane.f32.xlu0 %v464
          %v466 = vpop.xlane.xlu0 %465
          %v467 = vstv %s314
          %v468 = vadd.f32 %v466, %v467
          %s469 = scalar_lea.vmem %s281, %s321 [#allocation3]
          %vm470 = vcmask 7168
          %471 = vst.msk [vmem:[%s469] sm:$0xff] %vm470, %v468
        $region53: #{tpu_custom_call.1} parent=47 // loop_footer
          %s320 = sadd.s32 1, %s316
        $region54: #{tpu_custom_call.1} parent=47 // loop_footer_branch
          %315 = sbr.rel target = $region50
        $region55: #{tpu_custom_call.1} parent=47 // loop_exit
          _
        %s472 = sand.u32 %s179, 1
        %s473 = sand.u32 %s179, 1
        %s474 = smul.addr %s473, 16
        %s475 = scalar_lea.vmem [#allocation3], %s474
        // Predicated region
        $region56: #{tpu_custom_call.1} parent=47 // pred_check
          %p476 = pneg %p189
        $region57: #{tpu_custom_call.1} parent=47 // pred_check_branch
          %478 = sbr.rel (%p476) target = $region59
        $region58: #{tpu_custom_call.1} parent=47 // pred_region
          %s479 = smul.u32 2, %s19
          %s480 = ssub.s32 5, %s479
          %p481 = scmp.lt.s32.totalorder %s480, 2
          %s482 = scalar_select %p481, %s480, 2
          %s483 = smul.u32 128, %s482
          %p484 = scmp.ne.s32.totalorder 0, %s483
          %s485 = smul.addr %s479, 8
          %s486 = scalar_lea.vmem %s7, %s485
          // Predicated region
          $region60: #{tpu_custom_call.1} parent=58 // pred_check
            %p487 = pneg %p484
          $region61: #{tpu_custom_call.1} parent=58 // pred_check_branch
            %489 = sbr.rel (%p487) target = $region63
          $region62: #{tpu_custom_call.1} parent=58 // pred_region
            // Predicated region
            $region64: #{tpu_custom_call.1} parent=62 // pred_check
              _
            $region65: #{tpu_custom_call.1} parent=62 // pred_check_branch
              %491 = sbr.rel (0) target = $region67
            $region66: #{tpu_custom_call.1} parent=62 // pred_region
              // Predicated region
              $region86: #{tpu_custom_call.1} parent=66 // pred_check
                _
              $region87: #{tpu_custom_call.1} parent=66 // pred_check_branch
                %543 = sbr.rel (0) target = $region89
              $region88: #{tpu_custom_call.1} parent=66 // pred_region
                %s544 = sshrl.u32 %s482, 1
                // While loop
                $region90: #{tpu_custom_call.1} parent=88 // loop_pre_header
                  _
                $region91: #{tpu_custom_call.1} parent=88 // loop_header
                  %s546 = sphi 0, %s548
                  %p547 = scmp.ge.s32.totalorder %s546, %s544
                  %s551 = sphi 0, %s560
                  %s552 = sphi %s475, %s563
                  %s553 = sphi %s486, %s564
                $region92: #{tpu_custom_call.1} parent=88 // loop_header_branch
                  %550 = sbr.rel (%p547) target = $region96
                $region93: #{tpu_custom_call.1} parent=88 // loop_body
                  %v554 = vld [vmem:[%s552] sm:$0xff]
                  %555 = vst [vmem:[%s553] sm:$0xff] %v554
                  %v556 = vld [vmem:[%s552 + $0x8] sm:$0xff]
                  %557 = vst [vmem:[%s553 + $0x8] sm:$0xff] %v556
                  %s558 = sadd.s32 1, %s551
                  %p559 = scmp.ge.s32.totalorder %s558, %s544
                  %s560 = scalar_select %p559, 0, %s558
                  %s561 = smul.u32 %s560, 16
                  %s562 = smul.u32 %s560, 16
                  %s563 = scalar_lea.vmem %s475, %s561 [#allocation3]
                  %s564 = scalar_lea.vmem %s486, %s562
                $region94: #{tpu_custom_call.1} parent=88 // loop_footer
                  %s548 = sadd.s32 %s546, 1
                $region95: #{tpu_custom_call.1} parent=88 // loop_footer_branch
                  %545 = sbr.rel target = $region91
                $region96: #{tpu_custom_call.1} parent=88 // loop_exit
                  _
                %s565 = sshrl.u32 %s482, 1
                %s566 = sand.u32 %s482, 1
                %s567 = smul.u32 %s565, 2
                %s568 = smul.u32 8, %s567
                %s569 = scalar_lea.vmem %s475, %s568 [#allocation3]
                %s570 = smul.u32 8, %s567
                %s571 = scalar_lea.vmem %s486, %s570
                // While loop
                $region97: #{tpu_custom_call.1} parent=88 // loop_pre_header
                  _
                $region98: #{tpu_custom_call.1} parent=88 // loop_header
                  %s573 = sphi 0, %s575
                  %p574 = scmp.ge.s32.totalorder %s573, %s566
                  %s578 = sphi 0, %s585
                  %s579 = sphi %s569, %s588
                  %s580 = sphi %s571, %s589
                $region99: #{tpu_custom_call.1} parent=88 // loop_header_branch
                  %577 = sbr.rel (%p574) target = $region103
                $region100: #{tpu_custom_call.1} parent=88 // loop_body
                  %v581 = vld [vmem:[%s579] sm:$0xff]
                  %582 = vst [vmem:[%s580] sm:$0xff] %v581
                  %s583 = sadd.s32 1, %s578
                  %p584 = scmp.ge.s32.totalorder %s583, %s566
                  %s585 = scalar_select %p584, 0, %s583
                  %s586 = smul.u32 %s585, 8
                  %s587 = smul.u32 %s585, 8
                  %s588 = scalar_lea.vmem %s569, %s586 [#allocation3]
                  %s589 = scalar_lea.vmem %s571, %s587
                $region101: #{tpu_custom_call.1} parent=88 // loop_footer
                  %s575 = sadd.s32 %s573, 1
                $region102: #{tpu_custom_call.1} parent=88 // loop_footer_branch
                  %572 = sbr.rel target = $region98
                $region103: #{tpu_custom_call.1} parent=88 // loop_exit
                  _
              $region89: #{tpu_custom_call.1} parent=66 // pred_fallthru
                _
              // Predicated region
              $region104: #{tpu_custom_call.1} parent=66 // pred_check
                _
              $region105: #{tpu_custom_call.1} parent=66 // pred_check_branch
                %591 = sbr.rel target = $region107
              $region106: #{tpu_custom_call.1} parent=66 // pred_region
                _
              $region107: #{tpu_custom_call.1} parent=66 // pred_fallthru
                _
            $region67: #{tpu_custom_call.1} parent=62 // pred_fallthru
              _
            // Predicated region
            $region68: #{tpu_custom_call.1} parent=62 // pred_check
              _
            $region69: #{tpu_custom_call.1} parent=62 // pred_check_branch
              %493 = sbr.rel target = $region71
            $region70: #{tpu_custom_call.1} parent=62 // pred_region
              %s495 = ssub.s32 256, 1
              %s496 = sshrl.u32 %s482, 1
              // While loop
              $region72: #{tpu_custom_call.1} parent=70 // loop_pre_header
                _
              $region73: #{tpu_custom_call.1} parent=70 // loop_header
                %s498 = sphi 0, %s500
                %p499 = scmp.ge.s32.totalorder %s498, %s496
                %s503 = sphi 0, %s512
                %s504 = sphi %s475, %s515
                %s505 = sphi %s486, %s516
              $region74: #{tpu_custom_call.1} parent=70 // loop_header_branch
                %502 = sbr.rel (%p499) target = $region78
              $region75: #{tpu_custom_call.1} parent=70 // loop_body
                %v506 = vld [vmem:[%s504] sm:%s495]
                %507 = vst [vmem:[%s505] sm:%s495] %v506
                %v508 = vld [vmem:[%s504 + $0x8] sm:%s495]
                %509 = vst [vmem:[%s505 + $0x8] sm:%s495] %v508
                %s510 = sadd.s32 1, %s503
                %p511 = scmp.ge.s32.totalorder %s510, %s496
                %s512 = scalar_select %p511, 0, %s510
                %s513 = smul.u32 %s512, 16
                %s514 = smul.u32 %s512, 16
                %s515 = scalar_lea.vmem %s475, %s513 [#allocation3]
                %s516 = scalar_lea.vmem %s486, %s514
              $region76: #{tpu_custom_call.1} parent=70 // loop_footer
                %s500 = sadd.s32 %s498, 1
              $region77: #{tpu_custom_call.1} parent=70 // loop_footer_branch
                %497 = sbr.rel target = $region73
              $region78: #{tpu_custom_call.1} parent=70 // loop_exit
                _
              %s517 = sshrl.u32 %s482, 1
              %s518 = sand.u32 %s482, 1
              %s519 = smul.u32 %s517, 2
              %s520 = smul.u32 8, %s519
              %s521 = scalar_lea.vmem %s475, %s520 [#allocation3]
              %s522 = smul.u32 8, %s519
              %s523 = scalar_lea.vmem %s486, %s522
              // While loop
              $region79: #{tpu_custom_call.1} parent=70 // loop_pre_header
                _
              $region80: #{tpu_custom_call.1} parent=70 // loop_header
                %s525 = sphi 0, %s527
                %p526 = scmp.ge.s32.totalorder %s525, %s518
                %s530 = sphi 0, %s537
                %s531 = sphi %s521, %s540
                %s532 = sphi %s523, %s541
              $region81: #{tpu_custom_call.1} parent=70 // loop_header_branch
                %529 = sbr.rel (%p526) target = $region85
              $region82: #{tpu_custom_call.1} parent=70 // loop_body
                %v533 = vld [vmem:[%s531] sm:%s495]
                %534 = vst [vmem:[%s532] sm:%s495] %v533
                %s535 = sadd.s32 1, %s530
                %p536 = scmp.ge.s32.totalorder %s535, %s518
                %s537 = scalar_select %p536, 0, %s535
                %s538 = smul.u32 %s537, 8
                %s539 = smul.u32 %s537, 8
                %s540 = scalar_lea.vmem %s521, %s538 [#allocation3]
                %s541 = scalar_lea.vmem %s523, %s539
              $region83: #{tpu_custom_call.1} parent=70 // loop_footer
                %s527 = sadd.s32 %s525, 1
              $region84: #{tpu_custom_call.1} parent=70 // loop_footer_branch
                %524 = sbr.rel target = $region80
              $region85: #{tpu_custom_call.1} parent=70 // loop_exit
                _
            $region71: #{tpu_custom_call.1} parent=62 // pred_fallthru
              _
          $region63: #{tpu_custom_call.1} parent=58 // pred_fallthru
            _
          %592 = vnop
        $region59: #{tpu_custom_call.1} parent=47 // pred_fallthru
          _
      $region48: #{tpu_custom_call.1} parent=5 // pred_fallthru
        _
      %p593 = scmp.le.s32.totalorder 2, %s14
      // Predicated region
      $region108: #{tpu_custom_call.1} parent=5 // pred_check
        %p594 = pneg %p593
      $region109: #{tpu_custom_call.1} parent=5 // pred_check_branch
        %596 = sbr.rel (%p594) target = $region111
      $region110: #{tpu_custom_call.1} parent=5 // pred_region
        %s597 = ssub.s32 %s14, 2
        // Predicated region
        $region112: #{tpu_custom_call.1} parent=110 // pred_check
          %p598 = pneg %p195
        $region113: #{tpu_custom_call.1} parent=110 // pred_check_branch
          %600 = sbr.rel (%p598) target = $region115
        $region114: #{tpu_custom_call.1} parent=110 // pred_region
          %s601 = sand.u32 %s180, 1
          %s602 = sand.u32 %s180, 1
          %s603 = smul.addr %s602, 16
          %s604 = scalar_lea.vmem [#allocation3], %s603
        $region115: #{tpu_custom_call.1} parent=110 // pred_fallthru
          _
      $region111: #{tpu_custom_call.1} parent=5 // pred_fallthru
        _
    $region6: #{tpu_custom_call.1} parent=1 // loop_footer
      %s18 = sadd.s32 1, %s14
    $region7: #{tpu_custom_call.1} parent=1 // loop_footer_branch
      %13 = sbr.rel target = $region3
    $region8: #{tpu_custom_call.1} parent=1 // loop_exit
      _

</llo_original>
